<compile_context>
chip_gen: v6e
topology: v6e:2x2x1
jax: 0.10.0
libtpu: 0.0.40
codegen_flags: <defaults>
</compile_context>

<pallas_src>
import functools

import jax
import jax.numpy as jnp
import numpy as np
from jax.experimental import pallas as pl
from jax.experimental.pallas import tpu as pltpu

EPS = 1e-5
LANE = 128


def _round_up(x, m):
    return (x + m - 1) // m * m


# ----------------------------- Pallas kernels -----------------------------

def conv_stats_kernel(p_ref, w_ref, conv_ref, sum_ref, sq_ref):
    """Pass A: tiled conv-as-matmul + per-channel sum / sumsq accumulation."""
    i = pl.program_id(0)
    conv = jnp.dot(p_ref[...], w_ref[...], preferred_element_type=jnp.float32)
    conv_ref[...] = conv

    @pl.when(i == 0)
    def _():
        sum_ref[...] = jnp.zeros_like(sum_ref)
        sq_ref[...] = jnp.zeros_like(sq_ref)

    sum_ref[...] += jnp.sum(conv, axis=0, keepdims=True)
    sq_ref[...] += jnp.sum(conv * conv, axis=0, keepdims=True)


def conv2_shortcut_stats_kernel(p2_ref, w2_ref, ps_ref, ws_ref,
                                c2_ref, sc_ref,
                                s2_ref, q2_ref, ss_ref, qs_ref):
    """Pass A (downsample block): conv2 and 1x1 shortcut conv fused, + stats."""
    i = pl.program_id(0)
    c2 = jnp.dot(p2_ref[...], w2_ref[...], preferred_element_type=jnp.float32)
    sc = jnp.dot(ps_ref[...], ws_ref[...], preferred_element_type=jnp.float32)
    c2_ref[...] = c2
    sc_ref[...] = sc

    @pl.when(i == 0)
    def _():
        s2_ref[...] = jnp.zeros_like(s2_ref)
        q2_ref[...] = jnp.zeros_like(q2_ref)
        ss_ref[...] = jnp.zeros_like(ss_ref)
        qs_ref[...] = jnp.zeros_like(qs_ref)

    s2_ref[...] += jnp.sum(c2, axis=0, keepdims=True)
    q2_ref[...] += jnp.sum(c2 * c2, axis=0, keepdims=True)
    ss_ref[...] += jnp.sum(sc, axis=0, keepdims=True)
    qs_ref[...] += jnp.sum(sc * sc, axis=0, keepdims=True)


def _scale_shift(sum_row, sq_row, g, b, inv_m):
    """Per-channel (1, C) affine from global sum/sumsq: tiny VPU/EUP work."""
    mean = sum_row * inv_m
    var = sq_row * inv_m - mean * mean
    a = g * jax.lax.rsqrt(var + EPS)
    return a, b - mean * a


def bn_relu_kernel(inv_m, conv_ref, sum_ref, sq_ref, g_ref, b_ref, o_ref):
    """Pass B (stage 1): fused BN scale+shift + ReLU."""
    a, sh = _scale_shift(sum_ref[0:1, :], sq_ref[0:1, :],
                         g_ref[...], b_ref[...], inv_m)
    o_ref[...] = jnp.maximum(conv_ref[...] * a + sh, 0.0)


def final_id_kernel(inv_m, c2_ref, s2_ref, q2_ref, g2_ref, b2_ref,
                    x_ref, o_ref):
    """Pass B (identity shortcut): BN2 + identity add + ReLU."""
    a, sh = _scale_shift(s2_ref[0:1, :], q2_ref[0:1, :],
                         g2_ref[...], b2_ref[...], inv_m)
    o_ref[...] = jnp.maximum(c2_ref[...] * a + sh + x_ref[...], 0.0)


def final_ds_kernel(inv_m, c2_ref, s2_ref, q2_ref, g2_ref, b2_ref,
                    sc_ref, ss_ref, qs_ref, gs_ref, bs_ref, o_ref):
    """Pass B (conv shortcut): BN2 + BN_sc + add + ReLU."""
    a2, sh2 = _scale_shift(s2_ref[0:1, :], q2_ref[0:1, :],
                           g2_ref[...], b2_ref[...], inv_m)
    asc, shsc = _scale_shift(ss_ref[0:1, :], qs_ref[0:1, :],
                             gs_ref[...], bs_ref[...], inv_m)
    y = c2_ref[...] * a2 + sh2 + sc_ref[...] * asc + shsc
    o_ref[...] = jnp.maximum(y, 0.0)


# --------------------------- pallas_call wrappers --------------------------

def _conv_stats_call(patches, w, tm):
    mp, kp = patches.shape
    coutp = w.shape[1]
    gm = mp // tm
    return pl.pallas_call(
        conv_stats_kernel,
        grid=(gm,),
        in_specs=[pl.BlockSpec((tm, kp), lambda i: (i, 0)),
                  pl.BlockSpec((kp, coutp), lambda i: (0, 0))],
        out_specs=(pl.BlockSpec((tm, coutp), lambda i: (i, 0)),
                   pl.BlockSpec((8, coutp), lambda i: (0, 0)),
                   pl.BlockSpec((8, coutp), lambda i: (0, 0))),
        out_shape=(jax.ShapeDtypeStruct((mp, coutp), jnp.float32),
                   jax.ShapeDtypeStruct((8, coutp), jnp.float32),
                   jax.ShapeDtypeStruct((8, coutp), jnp.float32)),
        compiler_params=pltpu.CompilerParams(
            dimension_semantics=("arbitrary",)),
        cost_estimate=pl.CostEstimate(
            flops=2 * mp * kp * coutp,
            transcendentals=0,
            bytes_accessed=4 * (mp * kp + kp * coutp + mp * coutp)),
    )(patches, w)


def _conv2_sc_call(p2, w2, ps, ws, tm):
    mp, k2p = p2.shape
    coutp = w2.shape[1]
    cinp = ps.shape[1]
    gm = mp // tm
    return pl.pallas_call(
        conv2_shortcut_stats_kernel,
        grid=(gm,),
        in_specs=[pl.BlockSpec((tm, k2p), lambda i: (i, 0)),
                  pl.BlockSpec((k2p, coutp), lambda i: (0, 0)),
                  pl.BlockSpec((tm, cinp), lambda i: (i, 0)),
                  pl.BlockSpec((cinp, coutp), lambda i: (0, 0))],
        out_specs=(pl.BlockSpec((tm, coutp), lambda i: (i, 0)),
                   pl.BlockSpec((tm, coutp), lambda i: (i, 0)),
                   pl.BlockSpec((8, coutp), lambda i: (0, 0)),
                   pl.BlockSpec((8, coutp), lambda i: (0, 0)),
                   pl.BlockSpec((8, coutp), lambda i: (0, 0)),
                   pl.BlockSpec((8, coutp), lambda i: (0, 0))),
        out_shape=(jax.ShapeDtypeStruct((mp, coutp), jnp.float32),
                   jax.ShapeDtypeStruct((mp, coutp), jnp.float32),
                   jax.ShapeDtypeStruct((8, coutp), jnp.float32),
                   jax.ShapeDtypeStruct((8, coutp), jnp.float32),
                   jax.ShapeDtypeStruct((8, coutp), jnp.float32),
                   jax.ShapeDtypeStruct((8, coutp), jnp.float32)),
        compiler_params=pltpu.CompilerParams(
            dimension_semantics=("arbitrary",)),
        cost_estimate=pl.CostEstimate(
            flops=2 * mp * coutp * (k2p + cinp),
            transcendentals=0,
            bytes_accessed=4 * (mp * k2p + mp * cinp + (k2p + cinp) * coutp
                                + 2 * mp * coutp)),
    )(p2, w2, ps, ws)


def _bn_relu_call(conv, s, q, g, b, m_true, tm):
    mp, coutp = conv.shape
    gm = mp // tm
    return pl.pallas_call(
        functools.partial(bn_relu_kernel, 1.0 / m_true),
        grid=(gm,),
        in_specs=[pl.BlockSpec((tm, coutp), lambda i: (i, 0)),
                  pl.BlockSpec((8, coutp), lambda i: (0, 0)),
                  pl.BlockSpec((8, coutp), lambda i: (0, 0)),
                  pl.BlockSpec((1, coutp), lambda i: (0, 0)),
                  pl.BlockSpec((1, coutp), lambda i: (0, 0))],
        out_specs=pl.BlockSpec((tm, coutp), lambda i: (i, 0)),
        out_shape=jax.ShapeDtypeStruct((mp, coutp), jnp.float32),
        compiler_params=pltpu.CompilerParams(
            dimension_semantics=("parallel",)),
    )(conv, s, q, g, b)


def _final_id_call(c2, s2, q2, g2, b2, x_flat, m_true, tm):
    mp, coutp = c2.shape
    gm = mp // tm
    return pl.pallas_call(
        functools.partial(final_id_kernel, 1.0 / m_true),
        grid=(gm,),
        in_specs=[pl.BlockSpec((tm, coutp), lambda i: (i, 0)),
                  pl.BlockSpec((8, coutp), lambda i: (0, 0)),
                  pl.BlockSpec((8, coutp), lambda i: (0, 0)),
                  pl.BlockSpec((1, coutp), lambda i: (0, 0)),
                  pl.BlockSpec((1, coutp), lambda i: (0, 0)),
                  pl.BlockSpec((tm, coutp), lambda i: (i, 0))],
        out_specs=pl.BlockSpec((tm, coutp), lambda i: (i, 0)),
        out_shape=jax.ShapeDtypeStruct((mp, coutp), jnp.float32),
        compiler_params=pltpu.CompilerParams(
            dimension_semantics=("parallel",)),
    )(c2, s2, q2, g2, b2, x_flat)


def _final_ds_call(c2, s2, q2, g2, b2, sc, ss, qs, gs, bs, m_true, tm):
    mp, coutp = c2.shape
    gm = mp // tm
    return pl.pallas_call(
        functools.partial(final_ds_kernel, 1.0 / m_true),
        grid=(gm,),
        in_specs=[pl.BlockSpec((tm, coutp), lambda i: (i, 0)),
                  pl.BlockSpec((8, coutp), lambda i: (0, 0)),
                  pl.BlockSpec((8, coutp), lambda i: (0, 0)),
                  pl.BlockSpec((1, coutp), lambda i: (0, 0)),
                  pl.BlockSpec((1, coutp), lambda i: (0, 0)),
                  pl.BlockSpec((tm, coutp), lambda i: (i, 0)),
                  pl.BlockSpec((8, coutp), lambda i: (0, 0)),
                  pl.BlockSpec((8, coutp), lambda i: (0, 0)),
                  pl.BlockSpec((1, coutp), lambda i: (0, 0)),
                  pl.BlockSpec((1, coutp), lambda i: (0, 0))],
        out_specs=pl.BlockSpec((tm, coutp), lambda i: (i, 0)),
        out_shape=jax.ShapeDtypeStruct((mp, coutp), jnp.float32),
        compiler_params=pltpu.CompilerParams(
            dimension_semantics=("parallel",)),
    )(c2, s2, q2, g2, b2, sc, ss, qs, gs, bs)


# ------------------------------- JAX glue ---------------------------------

def _im2col(x_nhwc, k, stride, pad):
    n, h, w, c = x_nhwc.shape
    xp = jnp.pad(x_nhwc, ((0, 0), (pad, pad), (pad, pad), (0, 0)))
    ho = (h + 2 * pad - k) // stride + 1
    wo = (w + 2 * pad - k) // stride + 1
    cols = []
    for kh in range(k):
        for kw in range(k):
            cols.append(xp[:, kh:kh + stride * ho:stride,
                           kw:kw + stride * wo:stride, :])
    patches = jnp.concatenate(cols, axis=-1)              # (N, Ho, Wo, k*k*C)
    return patches.reshape(n * ho * wo, k * k * c), (n, ho, wo)


def _pad2d(a, rows, cols):
    r, c = a.shape
    return jnp.pad(a, ((0, rows - r), (0, cols - c)))


def _pad_vec(v, cols):
    return jnp.pad(v, (0, cols - v.shape[0])).reshape(1, cols)


def _flatten_w(w_oihw, ci_pad, co_pad):
    co, ci, kh, kw = w_oihw.shape
    w = jnp.transpose(w_oihw, (2, 3, 1, 0))               # (kh, kw, ci, co)
    w = jnp.pad(w, ((0, 0), (0, 0), (0, ci_pad - ci), (0, co_pad - co)))
    return w.reshape(kh * kw * ci_pad, co_pad)


def _choose_tm(m, k_max):
    """Row-tile: multiple of 8, <=512, patches tile capped ~4 MiB for VMEM."""
    m8 = _round_up(m, 8)
    cap = max(8, ((4 * 1024 * 1024) // (4 * k_max)) // 8 * 8)
    return min(512, m8, cap)


def basic_block_forward(x_nchw, params, stride):
    x = jnp.transpose(x_nchw, (0, 2, 3, 1)).astype(jnp.float32)   # NHWC
    n, h, w, cin = x.shape
    cout = params["w1"].shape[0]
    coutp = _round_up(cout, LANE)

    # ---- stage 1: conv1 (matmul) + BN1 (global stats, 2-pass) + ReLU ----
    p1, (n_, ho, wo) = _im2col(x, 3, stride, 1)
    m = n * ho * wo
    k1 = p1.shape[1]
    k1p = _round_up(k1, LANE)
    k2p = 9 * coutp
    tm = _choose_tm(m, max(k1p, k2p))
    mp = _round_up(m, tm)

    p1 = _pad2d(p1, mp, k1p)                              # zero rows/cols: no
    w1f = _pad2d(_flatten_w(params["w1"], cin, coutp), k1p, coutp)  # stat effect
    conv1, s1, q1 = _conv_stats_call(p1, w1f, tm)
    g1 = _pad_vec(params["g1"], coutp)
    b1 = _pad_vec(params["b1"], coutp)
    y1 = _bn_relu_call(conv1, s1, q1, g1, b1, m, tm)      # (mp, coutp)

    # ---- stage 2: conv2 + BN2 (+ shortcut) + add + ReLU ----
    y1_nhwc = y1[:m].reshape(n, ho, wo, coutp)
    p2, _ = _im2col(y1_nhwc, 3, 1, 1)                     # (m, 9*coutp)
    p2 = _pad2d(p2, mp, k2p)
    w2f = _flatten_w(params["w2"], coutp, coutp)
    g2 = _pad_vec(params["g2"], coutp)
    b2 = _pad_vec(params["b2"], coutp)

    if stride != 1 or cin != cout:
        cinp = _round_up(cin, LANE)
        # 1x1 stride-s conv patches == strided spatial subsample of x
        ps = _pad2d(x[:, ::stride, ::stride, :].reshape(m, cin), mp, cinp)
        wsf = _pad2d(params["ws"].reshape(cout, cin).T, cinp, coutp)
        gs = _pad_vec(params["gs"], coutp)
        bs = _pad_vec(params["bs"], coutp)
        c2, sc, s2, q2, ss, qs = _conv2_sc_call(p2, w2f, ps, wsf, tm)
        out = _final_ds_call(c2, s2, q2, g2, b2, sc, ss, qs, gs, bs, m, tm)
    else:
        x_flat = _pad2d(x.reshape(m, cin), mp, coutp)
        c2, s2, q2 = _conv_stats_call(p2, w2f, tm)
        out = _final_id_call(c2, s2, q2, g2, b2, x_flat, m, tm)

    out_nhwc = out[:m, :cout].reshape(n, ho, wo, cout)
    return jnp.transpose(out_nhwc, (0, 3, 1, 2))          # back to NCHW


# ------------------------- pure-JAX reference ------------------------------

def ref_forward(x_nchw, params, stride):
    def conv(x, w, s, pad):
        return jax.lax.conv_general_dilated(
            x, w, window_strides=(s, s), padding=[(pad, pad), (pad, pad)],
            dimension_numbers=("NCHW", "OIHW", "NCHW"))

    def bn(x, g, b):
        mean = jnp.mean(x, axis=(0, 2, 3), keepdims=True)
        var = jnp.mean((x - mean) ** 2, axis=(0, 2, 3), keepdims=True)
        return ((x - mean) * jax.lax.rsqrt(var + EPS)
                * g.reshape(1, -1, 1, 1) + b.reshape(1, -1, 1, 1))

    cin = x_nchw.shape[1]
    cout = params["w1"].shape[0]
    out = jax.nn.relu(bn(conv(x_nchw, params["w1"], stride, 1),
                         params["g1"], params["b1"]))
    out = bn(conv(out, params["w2"], 1, 1), params["g2"], params["b2"])
    if stride != 1 or cin != cout:
        sc = bn(conv(x_nchw, params["ws"], stride, 0),
                params["gs"], params["bs"])
    else:
        sc = x_nchw
    return jax.nn.relu(out + sc)


def make_params(key, cin, cout, stride):
    k1, k2, k3 = jax.random.split(key, 3)
    params = {
        "w1": jax.random.normal(k1, (cout, cin, 3, 3), jnp.float32) * 0.1,
        "g1": jnp.ones((cout,), jnp.float32),
        "b1": jnp.zeros((cout,), jnp.float32),
        "w2": jax.random.normal(k2, (cout, cout, 3, 3), jnp.float32) * 0.1,
        "g2": jnp.ones((cout,), jnp.float32),
        "b2": jnp.zeros((cout,), jnp.float32),
    }
    if stride != 1 or cin != cout:
        params["ws"] = jax.random.normal(k3, (cout, cin, 1, 1), jnp.float32) * 0.1
        params["gs"] = jnp.ones((cout,), jnp.float32)
        params["bs"] = jnp.zeros((cout,), jnp.float32)
    return params


if __name__ == "__main__":
    key = jax.random.PRNGKey(0)
    kx, kp1, kp2 = jax.random.split(key, 3)

    # Case 1: downsampling block (stride=2, channel expansion -> conv shortcut)
    N, Cin, H, W = 2, 4, 16, 16
    Cout, stride = 8, 2
    x = jax.random.normal(kx, (N, Cin, H, W), jnp.float32)
    params = make_params(kp1, Cin, Cout, stride)
    out = jax.block_until_ready(basic_block_forward(x, params, stride))
    ref = jax.block_until_ready(ref_forward(x, params, stride))
    assert out.shape == (N, Cout, H // stride, W // stride)
    np.testing.assert_allclose(np.asarray(out), np.asarray(ref),
                               rtol=2e-3, atol=2e-3)

    # Case 2: identity-shortcut block (stride=1, same channels)
    params_id = make_params(kp2, Cout, Cout, 1)
    x_id = jax.random.normal(kx, (N, Cout, H, W), jnp.float32)
    out_id = jax.block_until_ready(basic_block_forward(x_id, params_id, 1))
    ref_id = jax.block_until_ready(ref_forward(x_id, params_id, 1))
    assert out_id.shape == (N, Cout, H, W)
    np.testing.assert_allclose(np.asarray(out_id), np.asarray(ref_id),
                               rtol=2e-3, atol=2e-3)

    print("KERNEL_OK")
</pallas_src>

<mosaic_0001>
module attributes {stable_mosaic.version = 11 : i64} {
  func.func @conv_stats_kernel(%arg0: i32, %arg1: memref<128x128xf32, #tpu.memory_space<vmem>>, %arg2: memref<128x128xf32, #tpu.memory_space<vmem>>, %arg3: memref<128x128xf32, #tpu.memory_space<vmem>>, %arg4: memref<8x128xf32, #tpu.memory_space<vmem>>, %arg5: memref<8x128xf32, #tpu.memory_space<vmem>>) attributes {dimension_semantics = [#tpu.dimension_semantics<arbitrary>], iteration_bounds = array<i64: 1>, scalar_prefetch = 0 : i64, scratch_operands = 0 : i64, tpu.core_type = #tpu.core_type<tc>, window_params = [{transform_indices = @transform_0, window_bounds = array<i64: 128, 128>}, {pipeline_mode = #tpu.pipeline_mode<synchronous>, transform_indices = @transform_1, window_bounds = array<i64: 128, 128>}, {transform_indices = @transform_2, window_bounds = array<i64: 128, 128>}, {pipeline_mode = #tpu.pipeline_mode<synchronous>, transform_indices = @transform_3, window_bounds = array<i64: 8, 128>}, {pipeline_mode = #tpu.pipeline_mode<synchronous>, transform_indices = @transform_4, window_bounds = array<i64: 8, 128>}]} {
    %c0 = arith.constant 0 : index
    %c0_0 = arith.constant 0 : index
    %0 = vector.load %arg1[%c0, %c0_0] : memref<128x128xf32, #tpu.memory_space<vmem>>, vector<128x128xf32>
    %c0_1 = arith.constant 0 : index
    %c0_2 = arith.constant 0 : index
    %1 = vector.load %arg2[%c0_1, %c0_2] : memref<128x128xf32, #tpu.memory_space<vmem>>, vector<128x128xf32>
    %cst = arith.constant dense<0.000000e+00> : vector<128x128xf32>
    %2 = tpu.matmul %0, %1, %cst {dimension_numbers = #tpu.dot_dimension_numbers<[1], [0], [0], [1], [0, 0, 1, 1], [], []>} : vector<128x128xf32>, vector<128x128xf32>, vector<128x128xf32> -> vector<128x128xf32>
    %c0_3 = arith.constant 0 : index
    %c0_4 = arith.constant 0 : index
    %3 = vector.load %arg3[%c0_3, %c0_4] : memref<128x128xf32, #tpu.memory_space<vmem>>, vector<128x128xf32>
    tpu.vector_store %arg3[%c0_3, %c0_4], %2 {strides = array<i32>} : memref<128x128xf32, #tpu.memory_space<vmem>>, vector<128x128xf32>,
    %c0_i32 = arith.constant 0 : i32
    %4 = arith.cmpi eq, %arg0, %c0_i32 : i32
    %5 = arith.extui %4 : i1 to i32
    %c0_i32_5 = arith.constant 0 : i32
    %6 = arith.cmpi ne, %5, %c0_i32_5 : i32
    scf.if %6 {
      %cst_16 = arith.constant 0.000000e+00 : f32
      %20 = vector.broadcast %cst_16 : f32 to vector<8x128xf32>
      %c0_17 = arith.constant 0 : index
      %c0_18 = arith.constant 0 : index
      %21 = vector.load %arg4[%c0_17, %c0_18] : memref<8x128xf32, #tpu.memory_space<vmem>>, vector<8x128xf32>
      tpu.vector_store %arg4[%c0_17, %c0_18], %20 {strides = array<i32>} : memref<8x128xf32, #tpu.memory_space<vmem>>, vector<8x128xf32>,
      %cst_19 = arith.constant 0.000000e+00 : f32
      %22 = vector.broadcast %cst_19 : f32 to vector<8x128xf32>
      %c0_20 = arith.constant 0 : index
      %c0_21 = arith.constant 0 : index
      %23 = vector.load %arg5[%c0_20, %c0_21] : memref<8x128xf32, #tpu.memory_space<vmem>>, vector<8x128xf32>
      tpu.vector_store %arg5[%c0_20, %c0_21], %22 {strides = array<i32>} : memref<8x128xf32, #tpu.memory_space<vmem>>, vector<8x128xf32>,
    } else {
    }
    %c0_6 = arith.constant 0 : index
    %c0_7 = arith.constant 0 : index
    %7 = vector.load %arg4[%c0_6, %c0_7] : memref<8x128xf32, #tpu.memory_space<vmem>>, vector<8x128xf32>
    %cst_8 = arith.constant dense<0.000000e+00> : vector<128xf32>
    %8 = vector.multi_reduction <add>, %2, %cst_8 [0] : vector<128x128xf32> to vector<128xf32>
    %9 = vector.shape_cast %8 : vector<128xf32> to vector<1x128xf32>
    %10 = vector.broadcast %9 : vector<1x128xf32> to vector<8x128xf32>
    %11 = arith.addf %7, %10 : vector<8x128xf32>
    %c0_9 = arith.constant 0 : index
    %c0_10 = arith.constant 0 : index
    %12 = vector.load %arg4[%c0_9, %c0_10] : memref<8x128xf32, #tpu.memory_space<vmem>>, vector<8x128xf32>
    tpu.vector_store %arg4[%c0_9, %c0_10], %11 {strides = array<i32>} : memref<8x128xf32, #tpu.memory_space<vmem>>, vector<8x128xf32>,
    %c0_11 = arith.constant 0 : index
    %c0_12 = arith.constant 0 : index
    %13 = vector.load %arg5[%c0_11, %c0_12] : memref<8x128xf32, #tpu.memory_space<vmem>>, vector<8x128xf32>
    %14 = arith.mulf %2, %2 : vector<128x128xf32>
    %cst_13 = arith.constant dense<0.000000e+00> : vector<128xf32>
    %15 = vector.multi_reduction <add>, %14, %cst_13 [0] : vector<128x128xf32> to vector<128xf32>
    %16 = vector.shape_cast %15 : vector<128xf32> to vector<1x128xf32>
    %17 = vector.broadcast %16 : vector<1x128xf32> to vector<8x128xf32>
    %18 = arith.addf %13, %17 : vector<8x128xf32>
    %c0_14 = arith.constant 0 : index
    %c0_15 = arith.constant 0 : index
    %19 = vector.load %arg5[%c0_14, %c0_15] : memref<8x128xf32, #tpu.memory_space<vmem>>, vector<8x128xf32>
    tpu.vector_store %arg5[%c0_14, %c0_15], %18 {strides = array<i32>} : memref<8x128xf32, #tpu.memory_space<vmem>>, vector<8x128xf32>,
    return
  }
  func.func @transform_0(%arg0: i32) -> (i32, i32) {
    %c0_i32 = arith.constant 0 : i32
    %c0_i32_0 = arith.constant 0 : i32
    return %arg0, %c0_i32 : i32, i32
  }
  func.func @transform_1(%arg0: i32) -> (i32, i32) {
    %c0_i32 = arith.constant 0 : i32
    %c0_i32_0 = arith.constant 0 : i32
    %c0_i32_1 = arith.constant 0 : i32
    return %c0_i32, %c0_i32_0 : i32, i32
  }
  func.func @transform_2(%arg0: i32) -> (i32, i32) {
    %c0_i32 = arith.constant 0 : i32
    %c0_i32_0 = arith.constant 0 : i32
    return %arg0, %c0_i32 : i32, i32
  }
  func.func @transform_3(%arg0: i32) -> (i32, i32) {
    %c0_i32 = arith.constant 0 : i32
    %c0_i32_0 = arith.constant 0 : i32
    %c0_i32_1 = arith.constant 0 : i32
    return %c0_i32, %c0_i32_0 : i32, i32
  }
  func.func @transform_4(%arg0: i32) -> (i32, i32) {
    %c0_i32 = arith.constant 0 : i32
    %c0_i32_0 = arith.constant 0 : i32
    %c0_i32_1 = arith.constant 0 : i32
    return %c0_i32, %c0_i32_0 : i32, i32
  }
}

</mosaic_0001>

<llo_original>
// kernel: tpu_custom_call.1
$region0: #{tpu_custom_call.1}
  #allocation0 [shape = 'u32[]', space=smem, size = 0x4, offset = 0x4, fixed_abs, tag = 'smem constant byte address 0x4 - core index']
  #allocation1 [shape = 'u32[144,128]{1,0:T(1,128)}', space=vmem, size = 0x12000, scoped, tag = 'internal scratch']
  %s0 = inlined_call_operand.hbm [shape: f32[128,128], index: 0, kind: input, shape index: {}]
  %s1 = inlined_call_operand.hbm [shape: f32[128,128], index: 1, kind: input, shape index: {}]
  %s2 = inlined_call_operand.hbm [shape: f32[128,128], index: 2, kind: output, shape index: {0}]
  %s3 = inlined_call_operand.hbm [shape: f32[8,128], index: 3, kind: output, shape index: {1}]
  %s4 = inlined_call_operand.hbm [shape: f32[8,128], index: 4, kind: output, shape index: {2}]
  %5 = xla_tuple %s2, %s3, %s4
  %s6 = sld [smem:[#allocation0]]
  $region46: #{tpu_custom_call.1} parent=0
    _
  %s8 = ssub.s32 1, %s6
  %s9 = scalar_select 0, %s8, %s6
  $region1: #{tpu_custom_call.1} parent=0
    #allocation2 [shape = 'u8[65536]{0}', space=vmem, size = 0x10000, scoped, tag = 'input window, operand 0, single buffered']
    #allocation3 [shape = 's32[1]{0}', space=sflag, size = 0x4, scoped, tag = 'scoped memory for tpu_custom_call.1']
    #allocation4 [shape = 's32[1]{0}', space=sflag, size = 0x4, scoped, tag = 'scoped memory for tpu_custom_call.1']
    #allocation5 [shape = 'u8[65536]{0}', space=vmem, size = 0x10000, scoped, tag = 'input window, operand 1, single buffered']
    #allocation6 [shape = 's32[1]{0}', space=sflag, size = 0x4, scoped, tag = 'scoped memory for tpu_custom_call.1']
    #allocation7 [shape = 'u8[65536]{0}', space=vmem, size = 0x10000, scoped, tag = 'output window, operand 0, single buffered']
    #allocation8 [shape = 'u8[4096]{0}', space=vmem, size = 0x1000, scoped, tag = 'output window, operand 1, single buffered']
    #allocation9 [shape = 's32[1]{0}', space=sflag, size = 0x4, scoped, tag = 'scoped memory for tpu_custom_call.1']
    #allocation10 [shape = 'u8[4096]{0}', space=vmem, size = 0x1000, scoped, tag = 'output window, operand 2, single buffered']
    %10 = vsyncpa [#allocation3], 0
    %11 = vsyncpa [#allocation6], 0
    %12 = vsyncpa [#allocation4], 0
    %13 = vsyncpa [#allocation9], 0
    // Predicated region
    $region2: #{tpu_custom_call.1} parent=1 // pred_check
      _
    $region3: #{tpu_custom_call.1} parent=1 // pred_check_branch
      %15 = sbr.rel (0) target = $region5
    $region4: #{tpu_custom_call.1} parent=1 // pred_region
      %s17 = ssub.s32 2048, 2048
      %18 = vsyncadd [#allocation3], %s17
      %s19 = sshll.u32 [#allocation2], 4
      %s20 = int_to_ptr.vmem [resolvable:$true] %s19
      %25 = dma.hbm_to_vmem [thread:$0]  %s0, 2048, %s20, [#allocation3], 128, 128, 8
    $region5: #{tpu_custom_call.1} parent=1 // pred_fallthru
      _
    // Predicated region
    $region6: #{tpu_custom_call.1} parent=1 // pred_check
      _
    $region7: #{tpu_custom_call.1} parent=1 // pred_check_branch
      %27 = sbr.rel (0) target = $region9
    $region8: #{tpu_custom_call.1} parent=1 // pred_region
      %s29 = ssub.s32 2048, 2048
      %30 = vsyncadd [#allocation6], %s29
      %s31 = sshll.u32 [#allocation5], 4
      %s32 = int_to_ptr.vmem [resolvable:$true] %s31
      %37 = dma.hbm_to_vmem [thread:$0]  %s1, 2048, %s32, [#allocation6], 128, 128, 8
    $region9: #{tpu_custom_call.1} parent=1 // pred_fallthru
      _
    // Predicated region
    $region10: #{tpu_custom_call.1} parent=1 // pred_check
      _
    $region11: #{tpu_custom_call.1} parent=1 // pred_check_branch
      %39 = sbr.rel (0) target = $region13
    $region12: #{tpu_custom_call.1} parent=1 // pred_region
      %40 = dma.done [#allocation3], 2048
    $region13: #{tpu_custom_call.1} parent=1 // pred_fallthru
      _
    // Predicated region
    $region14: #{tpu_custom_call.1} parent=1 // pred_check
      _
    $region15: #{tpu_custom_call.1} parent=1 // pred_check_branch
      %42 = sbr.rel (0) target = $region17
    $region16: #{tpu_custom_call.1} parent=1 // pred_region
      %43 = dma.done [#allocation6], 2048
    $region17: #{tpu_custom_call.1} parent=1 // pred_fallthru
      _
    %v44 = vld [vmem:[#allocation2] sm:$0xff]
    %v45 = vld [vmem:[#allocation2 + $0x8] sm:$0xff]
    %v46 = vld [vmem:[#allocation2 + $0x10] sm:$0xff]
    %v47 = vld [vmem:[#allocation2 + $0x18] sm:$0xff]
    %v48 = vld [vmem:[#allocation2 + $0x20] sm:$0xff]
    %v49 = vld [vmem:[#allocation2 + $0x28] sm:$0xff]
    %v50 = vld [vmem:[#allocation2 + $0x30] sm:$0xff]
    %v51 = vld [vmem:[#allocation2 + $0x38] sm:$0xff]
    %v52 = vld [vmem:[#allocation2 + $0x40] sm:$0xff]
    %v53 = vld [vmem:[#allocation2 + $0x48] sm:$0xff]
    %v54 = vld [vmem:[#allocation2 + $0x50] sm:$0xff]
    %v55 = vld [vmem:[#allocation2 + $0x58] sm:$0xff]
    %v56 = vld [vmem:[#allocation2 + $0x60] sm:$0xff]
    %v57 = vld [vmem:[#allocation2 + $0x68] sm:$0xff]
    %v58 = vld [vmem:[#allocation2 + $0x70] sm:$0xff]
    %v59 = vld [vmem:[#allocation2 + $0x78] sm:$0xff]
    %v60 = vld [vmem:[#allocation5] sm:$0xff]
    %v61 = vld [vmem:[#allocation5 + $0x8] sm:$0xff]
    %v62 = vld [vmem:[#allocation5 + $0x10] sm:$0xff]
    %v63 = vld [vmem:[#allocation5 + $0x18] sm:$0xff]
    %v64 = vld [vmem:[#allocation5 + $0x20] sm:$0xff]
    %v65 = vld [vmem:[#allocation5 + $0x28] sm:$0xff]
    %v66 = vld [vmem:[#allocation5 + $0x30] sm:$0xff]
    %v67 = vld [vmem:[#allocation5 + $0x38] sm:$0xff]
    %v68 = vld [vmem:[#allocation5 + $0x40] sm:$0xff]
    %v69 = vld [vmem:[#allocation5 + $0x48] sm:$0xff]
    %v70 = vld [vmem:[#allocation5 + $0x50] sm:$0xff]
    %v71 = vld [vmem:[#allocation5 + $0x58] sm:$0xff]
    %v72 = vld [vmem:[#allocation5 + $0x60] sm:$0xff]
    %v73 = vld [vmem:[#allocation5 + $0x68] sm:$0xff]
    %v74 = vld [vmem:[#allocation5 + $0x70] sm:$0xff]
    %v75 = vld [vmem:[#allocation5 + $0x78] sm:$0xff]
    %76 = vmatprep.subr.mxu0 0.0
    %77 = vmatpush1.msra.mxu0 %v75
    %78 = vmatprep.subr.mxu0 0.0
    %79 = vmatpush1.msra.mxu0 %v74
    %80 = vmatprep.subr.mxu0 0.0
    %81 = vmatpush1.msra.mxu0 %v73
    %82 = vmatprep.subr.mxu0 0.0
    %83 = vmatpush1.msra.mxu0 %v72
    %84 = vmatprep.subr.mxu0 0.0
    %85 = vmatpush1.msra.mxu0 %v71
    %86 = vmatprep.subr.mxu0 0.0
    %87 = vmatpush1.msra.mxu0 %v70
    %88 = vmatprep.subr.mxu0 0.0
    %89 = vmatpush1.msra.mxu0 %v69
    %90 = vmatprep.subr.mxu0 0.0
    %91 = vmatpush1.msra.mxu0 %v68
    %92 = vmatprep.subr.mxu0 0.0
    %93 = vmatpush1.msra.mxu0 %v67
    %94 = vmatprep.subr.mxu0 0.0
    %95 = vmatpush1.msra.mxu0 %v66
    %96 = vmatprep.subr.mxu0 0.0
    %97 = vmatpush1.msra.mxu0 %v65
    %98 = vmatprep.subr.mxu0 0.0
    %99 = vmatpush1.msra.mxu0 %v64
    %100 = vmatprep.subr.mxu0 0.0
    %101 = vmatpush1.msra.mxu0 %v63
    %102 = vmatprep.subr.mxu0 0.0
    %103 = vmatpush1.msra.mxu0 %v62
    %104 = vmatprep.subr.mxu0 0.0
    %105 = vmatpush1.msra.mxu0 %v61
    %106 = vmatprep.subr.mxu0 0.0
    %107 = vmatpush1.msra.mxu0 %v60
    %108 = vmatprep.subr.mxu0 0.0
    %109 = vmatpush2.msra.mxu0 0.0
    %110 = vmatprep.subr.mxu0 0.0
    %111 = vmatpush2.msra.mxu0 0.0
    %112 = vmatprep.subr.mxu0 0.0
    %113 = vmatpush2.msra.mxu0 0.0
    %114 = vmatprep.subr.mxu0 0.0
    %115 = vmatpush2.msra.mxu0 0.0
    %116 = vmatprep.subr.mxu0 0.0
    %117 = vmatpush2.msra.mxu0 0.0
    %118 = vmatprep.subr.mxu0 0.0
    %119 = vmatpush2.msra.mxu0 0.0
    %120 = vmatprep.subr.mxu0 0.0
    %121 = vmatpush2.msra.mxu0 0.0
    %122 = vmatprep.subr.mxu0 0.0
    %123 = vmatpush2.msra.mxu0 0.0
    %124 = vmatprep.subr.mxu0 0.0
    %125 = vmatpush2.msra.mxu0 0.0
    %126 = vmatprep.subr.mxu0 0.0
    %127 = vmatpush2.msra.mxu0 0.0
    %128 = vmatprep.subr.mxu0 0.0
    %129 = vmatpush2.msra.mxu0 0.0
    %130 = vmatprep.subr.mxu0 0.0
    %131 = vmatpush2.msra.mxu0 0.0
    %132 = vmatprep.subr.mxu0 0.0
    %133 = vmatpush2.msra.mxu0 0.0
    %134 = vmatprep.subr.mxu0 0.0
    %135 = vmatpush2.msra.mxu0 0.0
    %136 = vmatprep.subr.mxu0 0.0
    %137 = vmatpush2.msra.mxu0 0.0
    %138 = vmatprep.subr.mxu0 0.0
    %139 = vmatpush2.msra.mxu0 0.0
    %140 = vmatprep.mubr.f32.mxu0 0.0
    %141 = vmatmul.mubr.f32.gmra.mxu0 %v44
    %v142 = vpop.f32.mrf.mxu0
    %v143 = vadd.f32 0.0, %v142
    %v144 = vpop.f32.mrf.mxu0
    %145 = vmatprep.mubr.f32.mxu0 0.0
    %146 = vmatmul.mubr.f32.gmra.mxu0 %v45
    %v147 = vpop.f32.mrf.mxu0
    %v148 = vadd.f32 0.0, %v147
    %v149 = vpop.f32.mrf.mxu0
    %150 = vmatprep.mubr.f32.mxu0 0.0
    %151 = vmatmul.mubr.f32.gmra.mxu0 %v46
    %v152 = vpop.f32.mrf.mxu0
    %v153 = vadd.f32 0.0, %v152
    %v154 = vpop.f32.mrf.mxu0
    %155 = vmatprep.mubr.f32.mxu0 0.0
    %156 = vmatmul.mubr.f32.gmra.mxu0 %v47
    %v157 = vpop.f32.mrf.mxu0
    %v158 = vadd.f32 0.0, %v157
    %v159 = vpop.f32.mrf.mxu0
    %160 = vmatprep.mubr.f32.mxu0 0.0
    %161 = vmatmul.mubr.f32.gmra.mxu0 %v48
    %v162 = vpop.f32.mrf.mxu0
    %v163 = vadd.f32 0.0, %v162
    %v164 = vpop.f32.mrf.mxu0
    %165 = vmatprep.mubr.f32.mxu0 0.0
    %166 = vmatmul.mubr.f32.gmra.mxu0 %v49
    %v167 = vpop.f32.mrf.mxu0
    %v168 = vadd.f32 0.0, %v167
    %v169 = vpop.f32.mrf.mxu0
    %170 = vmatprep.mubr.f32.mxu0 0.0
    %171 = vmatmul.mubr.f32.gmra.mxu0 %v50
    %v172 = vpop.f32.mrf.mxu0
    %v173 = vadd.f32 0.0, %v172
    %v174 = vpop.f32.mrf.mxu0
    %175 = vmatprep.mubr.f32.mxu0 0.0
    %176 = vmatmul.mubr.f32.gmra.mxu0 %v51
    %v177 = vpop.f32.mrf.mxu0
    %v178 = vadd.f32 0.0, %v177
    %v179 = vpop.f32.mrf.mxu0
    %180 = vmatprep.mubr.f32.mxu0 0.0
    %181 = vmatmul.mubr.f32.gmra.mxu0 %v52
    %v182 = vpop.f32.mrf.mxu0
    %v183 = vadd.f32 0.0, %v182
    %v184 = vpop.f32.mrf.mxu0
    %185 = vmatprep.mubr.f32.mxu0 0.0
    %186 = vmatmul.mubr.f32.gmra.mxu0 %v53
    %v187 = vpop.f32.mrf.mxu0
    %v188 = vadd.f32 0.0, %v187
    %v189 = vpop.f32.mrf.mxu0
    %190 = vmatprep.mubr.f32.mxu0 0.0
    %191 = vmatmul.mubr.f32.gmra.mxu0 %v54
    %v192 = vpop.f32.mrf.mxu0
    %v193 = vadd.f32 0.0, %v192
    %v194 = vpop.f32.mrf.mxu0
    %195 = vmatprep.mubr.f32.mxu0 0.0
    %196 = vmatmul.mubr.f32.gmra.mxu0 %v55
    %v197 = vpop.f32.mrf.mxu0
    %v198 = vadd.f32 0.0, %v197
    %v199 = vpop.f32.mrf.mxu0
    %200 = vmatprep.mubr.f32.mxu0 0.0
    %201 = vmatmul.mubr.f32.gmra.mxu0 %v56
    %v202 = vpop.f32.mrf.mxu0
    %v203 = vadd.f32 0.0, %v202
    %v204 = vpop.f32.mrf.mxu0
    %205 = vmatprep.mubr.f32.mxu0 0.0
    %206 = vmatmul.mubr.f32.gmra.mxu0 %v57
    %v207 = vpop.f32.mrf.mxu0
    %v208 = vadd.f32 0.0, %v207
    %v209 = vpop.f32.mrf.mxu0
    %210 = vmatprep.mubr.f32.mxu0 0.0
    %211 = vmatmul.mubr.f32.gmra.mxu0 %v58
    %v212 = vpop.f32.mrf.mxu0
    %v213 = vadd.f32 0.0, %v212
    %v214 = vpop.f32.mrf.mxu0
    %215 = vmatprep.mubr.f32.mxu0 0.0
    %216 = vmatmul.mubr.f32.gmra.mxu0 %v59
    %v217 = vpop.f32.mrf.mxu0
    %v218 = vadd.f32 0.0, %v217
    %v219 = vpop.f32.mrf.mxu0
    %220 = vdwg.mxu0
    %221 = vst [vmem:[#allocation7] sm:$0xff] %v143
    %222 = vst [vmem:[#allocation7 + $0x8] sm:$0xff] %v148
    %223 = vst [vmem:[#allocation7 + $0x10] sm:$0xff] %v153
    %224 = vst [vmem:[#allocation7 + $0x18] sm:$0xff] %v158
    %225 = vst [vmem:[#allocation7 + $0x20] sm:$0xff] %v163
    %226 = vst [vmem:[#allocation7 + $0x28] sm:$0xff] %v168
    %227 = vst [vmem:[#allocation7 + $0x30] sm:$0xff] %v173
    %228 = vst [vmem:[#allocation7 + $0x38] sm:$0xff] %v178
    %229 = vst [vmem:[#allocation7 + $0x40] sm:$0xff] %v183
    %230 = vst [vmem:[#allocation7 + $0x48] sm:$0xff] %v188
    %231 = vst [vmem:[#allocation7 + $0x50] sm:$0xff] %v193
    %232 = vst [vmem:[#allocation7 + $0x58] sm:$0xff] %v198
    %233 = vst [vmem:[#allocation7 + $0x60] sm:$0xff] %v203
    %234 = vst [vmem:[#allocation7 + $0x68] sm:$0xff] %v208
    %235 = vst [vmem:[#allocation7 + $0x70] sm:$0xff] %v213
    %236 = vst [vmem:[#allocation7 + $0x78] sm:$0xff] %v218
    %p237 = scmp.eq.s32.totalorder 0, 0
    // Predicated region
    $region18: #{tpu_custom_call.1} parent=1 // pred_check
      %p238 = pneg %p237
    $region19: #{tpu_custom_call.1} parent=1 // pred_check_branch
      %240 = sbr.rel (%p238) target = $region21
    $region20: #{tpu_custom_call.1} parent=1 // pred_region
      %241 = vst [vmem:[#allocation8] sm:$0xff] 0.0
      %242 = vst [vmem:[#allocation10] sm:$0xff] 0.0
    $region21: #{tpu_custom_call.1} parent=1 // pred_fallthru
      _
    %v243 = vld [vmem:[#allocation8] sm:$0xff]
    %v244 = vadd.f32 %v143, %v148
    %v245 = vadd.f32 %v244, %v153
    %v246 = vadd.f32 %v245, %v158
    %v247 = vadd.f32 %v246, %v163
    %v248 = vadd.f32 %v247, %v168
    %v249 = vadd.f32 %v248, %v173
    %v250 = vadd.f32 %v249, %v178
    %v251 = vadd.f32 %v250, %v183
    %v252 = vadd.f32 %v251, %v188
    %v253 = vadd.f32 %v252, %v193
    %v254 = vadd.f32 %v253, %v198
    %v255 = vadd.f32 %v254, %v203
    %v256 = vadd.f32 %v255, %v208
    %v257 = vadd.f32 %v256, %v213
    %v258 = vadd.f32 %v257, %v218
    %v259 = vrot.slane %v258, 4
    %v260 = vadd.f32 %v258, %v259
    %v261 = vrot.slane %v260, 2
    %v262 = vadd.f32 %v260, %v261
    %v263 = vrot.slane %v262, 1
    %v264 = vadd.f32 %v262, %v263
    %v265 = vadd.f32 %v243, %v264
    %266 = vst [vmem:[#allocation8] sm:$0xff] %v265
    %v267 = vld [vmem:[#allocation10] sm:$0xff]
    %v268 = vmul.f32 %v143, %v143
    %v269 = vmul.f32 %v148, %v148
    %v270 = vmul.f32 %v153, %v153
    %v271 = vmul.f32 %v158, %v158
    %v272 = vmul.f32 %v163, %v163
    %v273 = vmul.f32 %v168, %v168
    %v274 = vmul.f32 %v173, %v173
    %v275 = vmul.f32 %v178, %v178
    %v276 = vmul.f32 %v183, %v183
    %v277 = vmul.f32 %v188, %v188
    %v278 = vmul.f32 %v193, %v193
    %v279 = vmul.f32 %v198, %v198
    %v280 = vmul.f32 %v203, %v203
    %v281 = vmul.f32 %v208, %v208
    %v282 = vmul.f32 %v213, %v213
    %v283 = vmul.f32 %v218, %v218
    %v284 = vadd.f32 %v268, %v269
    %v285 = vadd.f32 %v284, %v270
    %v286 = vadd.f32 %v285, %v271
    %v287 = vadd.f32 %v286, %v272
    %v288 = vadd.f32 %v287, %v273
    %v289 = vadd.f32 %v288, %v274
    %v290 = vadd.f32 %v289, %v275
    %v291 = vadd.f32 %v290, %v276
    %v292 = vadd.f32 %v291, %v277
    %v293 = vadd.f32 %v292, %v278
    %v294 = vadd.f32 %v293, %v279
    %v295 = vadd.f32 %v294, %v280
    %v296 = vadd.f32 %v295, %v281
    %v297 = vadd.f32 %v296, %v282
    %v298 = vadd.f32 %v297, %v283
    %v299 = vrot.slane %v298, 4
    %v300 = vadd.f32 %v298, %v299
    %v301 = vrot.slane %v300, 2
    %v302 = vadd.f32 %v300, %v301
    %v303 = vrot.slane %v302, 1
    %v304 = vadd.f32 %v302, %v303
    %v305 = vadd.f32 %v267, %v304
    %306 = vst [vmem:[#allocation10] sm:$0xff] %v305
    // Predicated region
    $region22: #{tpu_custom_call.1} parent=1 // pred_check
      _
    $region23: #{tpu_custom_call.1} parent=1 // pred_check_branch
      %308 = sbr.rel (0) target = $region25
    $region24: #{tpu_custom_call.1} parent=1 // pred_region
      %s310 = ssub.s32 2048, 2048
      %311 = vsyncadd [#allocation4], %s310
      %s312 = sshll.u32 [#allocation7], 4
      %s313 = int_to_ptr.vmem [resolvable:$true] %s312
      %318 = dma.vmem_to_hbm [thread:$0]  %s313, 2048, %s2, [#allocation4], 128, 128, 8
    $region25: #{tpu_custom_call.1} parent=1 // pred_fallthru
      _
    // Predicated region
    $region26: #{tpu_custom_call.1} parent=1 // pred_check
      _
    $region27: #{tpu_custom_call.1} parent=1 // pred_check_branch
      %320 = sbr.rel (0) target = $region29
    $region28: #{tpu_custom_call.1} parent=1 // pred_region
      %s322 = ssub.s32 128, 128
      %323 = vsyncadd [#allocation9], %s322
      %s325 = sshll.u32 [#allocation8], 4
      %s326 = int_to_ptr.vmem [resolvable:$true] %s325
      %328 = dma.vmem_to_hbm [thread:$0]  %s326, 128, %s3, [#allocation9]
    $region29: #{tpu_custom_call.1} parent=1 // pred_fallthru
      _
    // Predicated region
    $region30: #{tpu_custom_call.1} parent=1 // pred_check
      _
    $region31: #{tpu_custom_call.1} parent=1 // pred_check_branch
      %330 = sbr.rel (0) target = $region33
    $region32: #{tpu_custom_call.1} parent=1 // pred_region
      %s332 = ssub.s32 128, 128
      %333 = vsyncadd [#allocation9], %s332
      %s335 = sshll.u32 [#allocation10], 4
      %s336 = int_to_ptr.vmem [resolvable:$true] %s335
      %338 = dma.vmem_to_hbm [thread:$0]  %s336, 128, %s4, [#allocation9]
    $region33: #{tpu_custom_call.1} parent=1 // pred_fallthru
      _
    // Predicated region
    $region34: #{tpu_custom_call.1} parent=1 // pred_check
      _
    $region35: #{tpu_custom_call.1} parent=1 // pred_check_branch
      %340 = sbr.rel (0) target = $region37
    $region36: #{tpu_custom_call.1} parent=1 // pred_region
      %341 = dma.done [#allocation4], 2048
    $region37: #{tpu_custom_call.1} parent=1 // pred_fallthru
      _
    // Predicated region
    $region38: #{tpu_custom_call.1} parent=1 // pred_check
      _
    $region39: #{tpu_custom_call.1} parent=1 // pred_check_branch
      %343 = sbr.rel (0) target = $region41
    $region40: #{tpu_custom_call.1} parent=1 // pred_region
      %344 = dma.done [#allocation9], 128
    $region41: #{tpu_custom_call.1} parent=1 // pred_fallthru
      _
    // Predicated region
    $region42: #{tpu_custom_call.1} parent=1 // pred_check
      _
    $region43: #{tpu_custom_call.1} parent=1 // pred_check_branch
      %346 = sbr.rel (0) target = $region45
    $region44: #{tpu_custom_call.1} parent=1 // pred_region
      %347 = dma.done [#allocation9], 128
    $region45: #{tpu_custom_call.1} parent=1 // pred_fallthru
      _
    %348 = vsyncpa [#allocation3], 1
    %349 = vsyncpa [#allocation6], 1
    %350 = vsyncpa [#allocation4], 1
    %351 = vsyncpa [#allocation9], 1

</llo_original>
